<compile_context>
chip_gen: v6e
topology: v6e:2x2x1
jax: 0.10.0
libtpu: 0.0.40
codegen_flags: <defaults>
</compile_context>

<pallas_src>
import jax
import jax.numpy as jnp
from jax import lax
from jax.experimental import pallas as pl
from jax.experimental.pallas import tpu as pltpu


# ------------------------------ Pallas kernel ------------------------------

def _dwconv_kernel(x_ref, prev_ref, next_ref, w_ref, b_ref, o_ref, pad_ref):
    """One (batch, H-tile) step of the depthwise 3x3, stride-1, pad-1 conv.

    x_ref    : (TH, W, C)     current tile (batch dim squeezed)
    prev_ref : (1,  W, C)     row just above the tile (row 0 of the image at i==0)
    next_ref : (1,  W, C)     row just below the tile (row H-1 of the image at i==last)
    w_ref    : (9, C)         depthwise taps, row ki*3+kj = weight[:, 0, ki, kj]
    b_ref    : (1, C)         bias
    o_ref    : (TH, W, C)     output tile
    pad_ref  : (TH+2, W, C)   I/O-dtype VMEM scratch holding the H-halo-extended tile
    """
    th, w_len, c = x_ref.shape
    i = pl.program_id(1)
    last = pl.num_programs(1) - 1

    # ---- build the H-halo-extended tile (no W padding, I/O dtype) ----
    pad_ref[1:th + 1] = x_ref[...]

    @pl.when(i == 0)
    def _():  # image top: zero halo row
        pad_ref[0:1] = jnp.zeros((1, w_len, c), pad_ref.dtype)

    @pl.when(i > 0)
    def _():
        pad_ref[0:1] = prev_ref[...]

    @pl.when(i == last)
    def _():  # image bottom: zero halo row
        pad_ref[th + 1:th + 2] = jnp.zeros((1, w_len, c), pad_ref.dtype)

    @pl.when(i < last)
    def _():
        pad_ref[th + 1:th + 2] = next_ref[...]

    # ---- W shifts via XLU rolls + iota edge masks (no misaligned slices) ----
    padded = pad_ref[...].astype(jnp.float32)                  # (TH+2, W, C)
    col = lax.broadcasted_iota(jnp.int32, padded.shape, 1)
    # positive-only shifts (jnp.roll semantics): result[w] = x[(w - shift) mod W]
    left = jnp.where(col == 0, 0.0, pltpu.roll(padded, 1, 1))          # x[., w-1]
    right = jnp.where(col == w_len - 1, 0.0,
                      pltpu.roll(padded, w_len - 1, 1))                # x[., w+1]

    # ---- hoisted weight / bias broadcasts ----
    wk = w_ref[...].astype(jnp.float32)                         # (9, C)
    w_t = [wk[k:k + 1].reshape(1, 1, c) for k in range(9)]      # (1,1,C) each
    bias = b_ref[...].astype(jnp.float32).reshape(1, 1, c)

    # ---- 9-tap MAC; H offsets are cheap row-offset value slices ----
    # centre tap + bias initialises the accumulator
    acc = padded[1:th + 1] * w_t[4] + bias
    acc = acc + left[1:th + 1] * w_t[3] + right[1:th + 1] * w_t[5]        # ki = 1
    acc = acc + padded[0:th] * w_t[1] + left[0:th] * w_t[0] + right[0:th] * w_t[2]       # ki = 0
    acc = acc + padded[2:th + 2] * w_t[7] + left[2:th + 2] * w_t[6] + right[2:th + 2] * w_t[8]  # ki = 2

    # single, lane-dense store of the output tile
    o_ref[...] = acc.astype(o_ref.dtype)


# --------------------------------- wrapper ----------------------------------

def _pick_tile_rows(height, width, channels, io_bytes, max_tile_rows=None,
                    vmem_budget_bytes=24 * 1024 * 1024):
    """Pick the H-tile size against a footprint-accurate VMEM budget.

    Per-row footprint ~= double-buffered in+out blocks (4x io) + halo scratch (1x io)
    + ~5 f32 tile-sized temporaries in the kernel body.  Prefers a large divisor of
    `height` (no padding); otherwise returns a balanced non-divisor tile and the
    wrapper pads H up by < tile rows.
    """
    per_row = max(1, width * channels * (5 * io_bytes + 20))
    cap = max(1, vmem_budget_bytes // per_row)
    if max_tile_rows is not None:
        cap = min(cap, max_tile_rows)
    cap = min(cap, height)

    best_div = 1
    for t in range(1, cap + 1):
        if height % t == 0:
            best_div = t
    if best_div >= max(cap // 2, min(cap, 8)):
        return best_div
    # No good divisor: balanced tiles <= cap; wrapper pads H up to a multiple.
    n = -(-height // cap)
    return -(-height // n)


def segformer_dwconv(hidden_states, height, width, weight, bias, *,
                     max_tile_rows=None, vmem_budget_bytes=24 * 1024 * 1024):
    """Pallas equivalent of SegformerDWConv.forward.

    hidden_states: (B, L, C) with L == height * width
    weight:        (C, 1, 3, 3)  (PyTorch depthwise Conv2d layout, groups=C)
    bias:          (C,)
    returns:       (B, L, C) in the dtype of hidden_states (f32 accumulation inside).
    """
    B, L, C = hidden_states.shape
    assert L == height * width, (L, height, width)
    io_bytes = jnp.dtype(hidden_states.dtype).itemsize

    # torch: hs.transpose(1,2).view(B,C,H,W) places hs[b, h*W+w, c] at (b,c,h,w);
    # the NHWC view below is the same tensor with channels last (TPU lanes).
    x = hidden_states.reshape(B, height, width, C)
    w9 = weight.reshape(C, 9).T                    # (9, C); row = ki*3 + kj
    b2 = bias.reshape(1, C)

    tile_h = _pick_tile_rows(height, width, C, io_bytes, max_tile_rows,
                             vmem_budget_bytes)
    n_h = -(-height // tile_h)
    hp = n_h * tile_h
    if hp != height:
        # No good divisor of H: pad up by < tile_h zero rows (zero rows keep the
        # bottom-edge zero-padding semantics; extra output rows are sliced off).
        x = jnp.pad(x, ((0, 0), (0, hp - height), (0, 0), (0, 0)))

    flops = (2 * 9 + 1) * B * height * width * C
    bytes_accessed = int(io_bytes * (2 * B * hp * width * C        # x in, y out
                                     + 2 * B * n_h * width * C)    # halo rows
                         + jnp.dtype(weight.dtype).itemsize * 10 * C)
    cost = pl.CostEstimate(flops=flops, transcendentals=0,
                           bytes_accessed=bytes_accessed)

    out = pl.pallas_call(
        _dwconv_kernel,
        out_shape=jax.ShapeDtypeStruct((B, hp, width, C), hidden_states.dtype),
        grid=(B, n_h),
        in_specs=[
            # current tile
            pl.BlockSpec((None, tile_h, width, C), lambda b, i: (b, i, 0, 0)),
            # halo rows come straight from x via clamped row indices (block H = 1
            # row, so the block index is the row index); the clamped duplicates at
            # the image top/bottom are zeroed inside the kernel with pl.when.
            pl.BlockSpec((None, 1, width, C),
                         lambda b, i: (b, jnp.maximum(i * tile_h - 1, 0), 0, 0)),
            pl.BlockSpec((None, 1, width, C),
                         lambda b, i: (b, jnp.minimum((i + 1) * tile_h, hp - 1), 0, 0)),
            pl.BlockSpec((9, C), lambda b, i: (0, 0)),     # resident weights
            pl.BlockSpec((1, C), lambda b, i: (0, 0)),     # resident bias
        ],
        out_specs=pl.BlockSpec((None, tile_h, width, C), lambda b, i: (b, i, 0, 0)),
        scratch_shapes=[pltpu.VMEM((tile_h + 2, width, C), hidden_states.dtype)],
        compiler_params=pltpu.CompilerParams(
            dimension_semantics=("parallel", "parallel"),
            vmem_limit_bytes=48 * 1024 * 1024),
        cost_estimate=cost,
    )(x, x, x, w9, b2)

    if hp != height:
        out = out[:, :height]
    return out.reshape(B, L, C)


# ------------------------------ pure-JAX reference ---------------------------

def dwconv_reference(hidden_states, height, width, weight, bias):
    B, L, C = hidden_states.shape
    x = hidden_states.reshape(B, height, width, C)
    y = lax.conv_general_dilated(
        x, jnp.transpose(weight, (2, 3, 1, 0)),        # (3, 3, 1, C) HWIO
        window_strides=(1, 1), padding=((1, 1), (1, 1)),
        dimension_numbers=("NHWC", "HWIO", "NHWC"),
        feature_group_count=C,
        precision=lax.Precision.HIGHEST)
    return (y + bias).reshape(B, L, C)


# ----------------------------------- main ------------------------------------

if __name__ == "__main__":
    key = jax.random.PRNGKey(0)
    k_x, k_w, k_b, k_x2 = jax.random.split(key, 4)

    # ---- check 1: f32 I/O, H divisible by the tile (two H-tiles -> halo path) ----
    B, H, W, C = 2, 16, 16, 128          # C = 128 -> fully lane-dense tiles
    L = H * W
    hidden_states = jax.random.normal(k_x, (B, L, C), jnp.float32)
    weight = jax.random.normal(k_w, (C, 1, 3, 3), jnp.float32) * 0.1
    bias = jax.random.normal(k_b, (C,), jnp.float32) * 0.1

    run = jax.jit(lambda hs, w, b: segformer_dwconv(hs, H, W, w, b, max_tile_rows=8))
    out = run(hidden_states, weight, bias)
    jax.block_until_ready(out)

    ref = dwconv_reference(hidden_states, H, W, weight, bias)
    assert out.shape == (B, L, C), out.shape
    assert bool(jnp.all(jnp.isfinite(out)))
    max_err = float(jnp.max(jnp.abs(out - ref)))
    assert max_err < 1e-4, max_err

    # ---- check 2: bf16 I/O, H with no good divisor (wrapper pads H up) ----
    H2, W2, B2 = 13, 16, 1
    L2 = H2 * W2
    hs2 = jax.random.normal(k_x2, (B2, L2, C), jnp.float32).astype(jnp.bfloat16)
    w_bf = weight.astype(jnp.bfloat16)
    b_bf = bias.astype(jnp.bfloat16)

    run2 = jax.jit(lambda hs, w, b: segformer_dwconv(hs, H2, W2, w, b, max_tile_rows=8))
    out2 = run2(hs2, w_bf, b_bf)
    jax.block_until_ready(out2)

    ref2 = dwconv_reference(hs2.astype(jnp.float32), H2, W2,
                            w_bf.astype(jnp.float32), b_bf.astype(jnp.float32))
    assert out2.shape == (B2, L2, C), out2.shape
    assert bool(jnp.all(jnp.isfinite(out2.astype(jnp.float32))))
    max_err2 = float(jnp.max(jnp.abs(out2.astype(jnp.float32) - ref2)))
    assert max_err2 < 2e-2, max_err2

    print("KERNEL_OK")
</pallas_src>

<mosaic_0001>
module attributes {stable_mosaic.version = 11 : i64} {
  func.func @_dwconv_kernel(%arg0: i32, %arg1: i32, %arg2: memref<1x8x16x128xf32, #tpu.memory_space<vmem>>, %arg3: memref<1x1x16x128xf32, #tpu.memory_space<vmem>>, %arg4: memref<1x1x16x128xf32, #tpu.memory_space<vmem>>, %arg5: memref<9x128xf32, #tpu.memory_space<vmem>>, %arg6: memref<1x128xf32, #tpu.memory_space<vmem>>, %arg7: memref<1x8x16x128xf32, #tpu.memory_space<vmem>>, %arg8: memref<10x16x128xf32, #tpu.memory_space<vmem>>) attributes {dimension_semantics = [#tpu.dimension_semantics<parallel>, #tpu.dimension_semantics<parallel>], iteration_bounds = array<i64: 2, 2>, scalar_prefetch = 0 : i64, scratch_operands = 1 : i64, tpu.core_type = #tpu.core_type<tc>, window_params = [{transform_indices = @transform_0, window_bounds = array<i64: 1, 8, 16, 128>}, {transform_indices = @transform_1, window_bounds = array<i64: 1, 1, 16, 128>}, {transform_indices = @transform_2, window_bounds = array<i64: 1, 1, 16, 128>}, {pipeline_mode = #tpu.pipeline_mode<synchronous>, transform_indices = @transform_3, window_bounds = array<i64: 9, 128>}, {pipeline_mode = #tpu.pipeline_mode<synchronous>, transform_indices = @transform_4, window_bounds = array<i64: 1, 128>}, {transform_indices = @transform_5, window_bounds = array<i64: 1, 8, 16, 128>}]} {
    %c0 = arith.constant 0 : index
    %c0_0 = arith.constant 0 : index
    %c0_1 = arith.constant 0 : index
    %c0_2 = arith.constant 0 : index
    %0 = vector.load %arg2[%c0, %c0_0, %c0_1, %c0_2] : memref<1x8x16x128xf32, #tpu.memory_space<vmem>>, vector<1x8x16x128xf32>
    %1 = vector.shape_cast %0 : vector<1x8x16x128xf32> to vector<8x16x128xf32>
    %c1 = arith.constant 1 : index
    %c0_3 = arith.constant 0 : index
    %c0_4 = arith.constant 0 : index
    %2 = vector.load %arg8[%c1, %c0_3, %c0_4] : memref<10x16x128xf32, #tpu.memory_space<vmem>>, vector<8x16x128xf32>
    tpu.vector_store %arg8[%c1, %c0_3, %c0_4], %1 {strides = array<i32>} : memref<10x16x128xf32, #tpu.memory_space<vmem>>, vector<8x16x128xf32>,
    %c0_i32 = arith.constant 0 : i32
    %3 = arith.cmpi eq, %arg1, %c0_i32 : i32
    %4 = arith.extui %3 : i1 to i32
    %c0_i32_5 = arith.constant 0 : i32
    %5 = arith.cmpi ne, %4, %c0_i32_5 : i32
    scf.if %5 {
      %cst_26 = arith.constant 0.000000e+00 : f32
      %88 = vector.broadcast %cst_26 : f32 to vector<1x16x128xf32>
      %c0_27 = arith.constant 0 : index
      %c0_28 = arith.constant 0 : index
      %c0_29 = arith.constant 0 : index
      %89 = vector.load %arg8[%c0_27, %c0_28, %c0_29] : memref<10x16x128xf32, #tpu.memory_space<vmem>>, vector<1x16x128xf32>
      tpu.vector_store %arg8[%c0_27, %c0_28, %c0_29], %88 {strides = array<i32>} : memref<10x16x128xf32, #tpu.memory_space<vmem>>, vector<1x16x128xf32>,
    } else {
    }
    %c0_i32_6 = arith.constant 0 : i32
    %6 = arith.cmpi sgt, %arg1, %c0_i32_6 : i32
    %7 = arith.extui %6 : i1 to i32
    %c0_i32_7 = arith.constant 0 : i32
    %8 = arith.cmpi ne, %7, %c0_i32_7 : i32
    scf.if %8 {
      %c0_26 = arith.constant 0 : index
      %c0_27 = arith.constant 0 : index
      %c0_28 = arith.constant 0 : index
      %c0_29 = arith.constant 0 : index
      %88 = vector.load %arg3[%c0_26, %c0_27, %c0_28, %c0_29] : memref<1x1x16x128xf32, #tpu.memory_space<vmem>>, vector<1x1x16x128xf32>
      %89 = vector.shape_cast %88 : vector<1x1x16x128xf32> to vector<1x16x128xf32>
      %c0_30 = arith.constant 0 : index
      %c0_31 = arith.constant 0 : index
      %c0_32 = arith.constant 0 : index
      %90 = vector.load %arg8[%c0_30, %c0_31, %c0_32] : memref<10x16x128xf32, #tpu.memory_space<vmem>>, vector<1x16x128xf32>
      tpu.vector_store %arg8[%c0_30, %c0_31, %c0_32], %89 {strides = array<i32>} : memref<10x16x128xf32, #tpu.memory_space<vmem>>, vector<1x16x128xf32>,
    } else {
    }
    %c1_i32 = arith.constant 1 : i32
    %9 = arith.cmpi eq, %arg1, %c1_i32 : i32
    %10 = arith.extui %9 : i1 to i32
    %c0_i32_8 = arith.constant 0 : i32
    %11 = arith.cmpi ne, %10, %c0_i32_8 : i32
    scf.if %11 {
      %cst_26 = arith.constant 0.000000e+00 : f32
      %88 = vector.broadcast %cst_26 : f32 to vector<1x16x128xf32>
      %c9 = arith.constant 9 : index
      %c0_27 = arith.constant 0 : index
      %c0_28 = arith.constant 0 : index
      %89 = vector.load %arg8[%c9, %c0_27, %c0_28] : memref<10x16x128xf32, #tpu.memory_space<vmem>>, vector<1x16x128xf32>
      tpu.vector_store %arg8[%c9, %c0_27, %c0_28], %88 {strides = array<i32>} : memref<10x16x128xf32, #tpu.memory_space<vmem>>, vector<1x16x128xf32>,
    } else {
    }
    %c1_i32_9 = arith.constant 1 : i32
    %12 = arith.cmpi slt, %arg1, %c1_i32_9 : i32
    %13 = arith.extui %12 : i1 to i32
    %c0_i32_10 = arith.constant 0 : i32
    %14 = arith.cmpi ne, %13, %c0_i32_10 : i32
    scf.if %14 {
      %c0_26 = arith.constant 0 : index
      %c0_27 = arith.constant 0 : index
      %c0_28 = arith.constant 0 : index
      %c0_29 = arith.constant 0 : index
      %88 = vector.load %arg4[%c0_26, %c0_27, %c0_28, %c0_29] : memref<1x1x16x128xf32, #tpu.memory_space<vmem>>, vector<1x1x16x128xf32>
      %89 = vector.shape_cast %88 : vector<1x1x16x128xf32> to vector<1x16x128xf32>
      %c9 = arith.constant 9 : index
      %c0_30 = arith.constant 0 : index
      %c0_31 = arith.constant 0 : index
      %90 = vector.load %arg8[%c9, %c0_30, %c0_31] : memref<10x16x128xf32, #tpu.memory_space<vmem>>, vector<1x16x128xf32>
      tpu.vector_store %arg8[%c9, %c0_30, %c0_31], %89 {strides = array<i32>} : memref<10x16x128xf32, #tpu.memory_space<vmem>>, vector<1x16x128xf32>,
    } else {
    }
    %c0_11 = arith.constant 0 : index
    %c0_12 = arith.constant 0 : index
    %c0_13 = arith.constant 0 : index
    %15 = vector.load %arg8[%c0_11, %c0_12, %c0_13] : memref<10x16x128xf32, #tpu.memory_space<vmem>>, vector<10x16x128xf32>
    %16 = tpu.iota {dimensions = array<i32: 1>} : vector<10x16x128xi32>
    %c0_i32_14 = arith.constant 0 : i32
    %17 = vector.broadcast %c0_i32_14 : i32 to vector<10x16x128xi32>
    %18 = arith.cmpi eq, %16, %17 : vector<10x16x128xi32>
    %c1_i32_15 = arith.constant 1 : i32
    %19 = tpu.dynamic_rotate %15 by %c1_i32_15 dim 1 : vector<10x16x128xf32>, i32 -> vector<10x16x128xf32>
    %cst = arith.constant 0.000000e+00 : f32
    %20 = vector.broadcast %cst : f32 to vector<10x16x128xf32>
    %21 = arith.select %18, %20, %19 : vector<10x16x128xi1>, vector<10x16x128xf32>
    %c15_i32 = arith.constant 15 : i32
    %22 = vector.broadcast %c15_i32 : i32 to vector<10x16x128xi32>
    %23 = arith.cmpi eq, %16, %22 : vector<10x16x128xi32>
    %c15_i32_16 = arith.constant 15 : i32
    %24 = tpu.dynamic_rotate %15 by %c15_i32_16 dim 1 : vector<10x16x128xf32>, i32 -> vector<10x16x128xf32>
    %cst_17 = arith.constant 0.000000e+00 : f32
    %25 = vector.broadcast %cst_17 : f32 to vector<10x16x128xf32>
    %26 = arith.select %23, %25, %24 : vector<10x16x128xi1>, vector<10x16x128xf32>
    %c0_18 = arith.constant 0 : index
    %c0_19 = arith.constant 0 : index
    %27 = vector.load %arg5[%c0_18, %c0_19] : memref<9x128xf32, #tpu.memory_space<vmem>>, vector<9x128xf32>
    %28 = vector.extract_strided_slice %27 {offsets = [0, 0], sizes = [1, 128], strides = [1, 1]} : vector<9x128xf32> to vector<1x128xf32>
    %29 = vector.shape_cast %28 : vector<1x128xf32> to vector<1x1x128xf32>
    %30 = vector.extract_strided_slice %27 {offsets = [1, 0], sizes = [1, 128], strides = [1, 1]} : vector<9x128xf32> to vector<1x128xf32>
    %31 = vector.shape_cast %30 : vector<1x128xf32> to vector<1x1x128xf32>
    %32 = vector.extract_strided_slice %27 {offsets = [2, 0], sizes = [1, 128], strides = [1, 1]} : vector<9x128xf32> to vector<1x128xf32>
    %33 = vector.shape_cast %32 : vector<1x128xf32> to vector<1x1x128xf32>
    %34 = vector.extract_strided_slice %27 {offsets = [3, 0], sizes = [1, 128], strides = [1, 1]} : vector<9x128xf32> to vector<1x128xf32>
    %35 = vector.shape_cast %34 : vector<1x128xf32> to vector<1x1x128xf32>
    %36 = vector.extract_strided_slice %27 {offsets = [4, 0], sizes = [1, 128], strides = [1, 1]} : vector<9x128xf32> to vector<1x128xf32>
    %37 = vector.shape_cast %36 : vector<1x128xf32> to vector<1x1x128xf32>
    %38 = vector.extract_strided_slice %27 {offsets = [5, 0], sizes = [1, 128], strides = [1, 1]} : vector<9x128xf32> to vector<1x128xf32>
    %39 = vector.shape_cast %38 : vector<1x128xf32> to vector<1x1x128xf32>
    %40 = vector.extract_strided_slice %27 {offsets = [6, 0], sizes = [1, 128], strides = [1, 1]} : vector<9x128xf32> to vector<1x128xf32>
    %41 = vector.shape_cast %40 : vector<1x128xf32> to vector<1x1x128xf32>
    %42 = vector.extract_strided_slice %27 {offsets = [7, 0], sizes = [1, 128], strides = [1, 1]} : vector<9x128xf32> to vector<1x128xf32>
    %43 = vector.shape_cast %42 : vector<1x128xf32> to vector<1x1x128xf32>
    %44 = vector.extract_strided_slice %27 {offsets = [8, 0], sizes = [1, 128], strides = [1, 1]} : vector<9x128xf32> to vector<1x128xf32>
    %45 = vector.shape_cast %44 : vector<1x128xf32> to vector<1x1x128xf32>
    %c0_20 = arith.constant 0 : index
    %c0_21 = arith.constant 0 : index
    %46 = vector.load %arg6[%c0_20, %c0_21] : memref<1x128xf32, #tpu.memory_space<vmem>>, vector<1x128xf32>
    %47 = vector.shape_cast %46 : vector<1x128xf32> to vector<1x1x128xf32>
    %48 = vector.extract_strided_slice %15 {offsets = [1, 0, 0], sizes = [8, 16, 128], strides = [1, 1, 1]} : vector<10x16x128xf32> to vector<8x16x128xf32>
    %49 = vector.broadcast %37 : vector<1x1x128xf32> to vector<8x16x128xf32>
    %50 = arith.mulf %48, %49 : vector<8x16x128xf32>
    %51 = vector.broadcast %47 : vector<1x1x128xf32> to vector<8x16x128xf32>
    %52 = arith.addf %50, %51 : vector<8x16x128xf32>
    %53 = vector.extract_strided_slice %21 {offsets = [1, 0, 0], sizes = [8, 16, 128], strides = [1, 1, 1]} : vector<10x16x128xf32> to vector<8x16x128xf32>
    %54 = vector.broadcast %35 : vector<1x1x128xf32> to vector<8x16x128xf32>
    %55 = arith.mulf %53, %54 : vector<8x16x128xf32>
    %56 = arith.addf %52, %55 : vector<8x16x128xf32>
    %57 = vector.extract_strided_slice %26 {offsets = [1, 0, 0], sizes = [8, 16, 128], strides = [1, 1, 1]} : vector<10x16x128xf32> to vector<8x16x128xf32>
    %58 = vector.broadcast %39 : vector<1x1x128xf32> to vector<8x16x128xf32>
    %59 = arith.mulf %57, %58 : vector<8x16x128xf32>
    %60 = arith.addf %56, %59 : vector<8x16x128xf32>
    %61 = vector.extract_strided_slice %15 {offsets = [0, 0, 0], sizes = [8, 16, 128], strides = [1, 1, 1]} : vector<10x16x128xf32> to vector<8x16x128xf32>
    %62 = vector.broadcast %31 : vector<1x1x128xf32> to vector<8x16x128xf32>
    %63 = arith.mulf %61, %62 : vector<8x16x128xf32>
    %64 = arith.addf %60, %63 : vector<8x16x128xf32>
    %65 = vector.extract_strided_slice %21 {offsets = [0, 0, 0], sizes = [8, 16, 128], strides = [1, 1, 1]} : vector<10x16x128xf32> to vector<8x16x128xf32>
    %66 = vector.broadcast %29 : vector<1x1x128xf32> to vector<8x16x128xf32>
    %67 = arith.mulf %65, %66 : vector<8x16x128xf32>
    %68 = arith.addf %64, %67 : vector<8x16x128xf32>
    %69 = vector.extract_strided_slice %26 {offsets = [0, 0, 0], sizes = [8, 16, 128], strides = [1, 1, 1]} : vector<10x16x128xf32> to vector<8x16x128xf32>
    %70 = vector.broadcast %33 : vector<1x1x128xf32> to vector<8x16x128xf32>
    %71 = arith.mulf %69, %70 : vector<8x16x128xf32>
    %72 = arith.addf %68, %71 : vector<8x16x128xf32>
    %73 = vector.extract_strided_slice %15 {offsets = [2, 0, 0], sizes = [8, 16, 128], strides = [1, 1, 1]} : vector<10x16x128xf32> to vector<8x16x128xf32>
    %74 = vector.broadcast %43 : vector<1x1x128xf32> to vector<8x16x128xf32>
    %75 = arith.mulf %73, %74 : vector<8x16x128xf32>
    %76 = arith.addf %72, %75 : vector<8x16x128xf32>
    %77 = vector.extract_strided_slice %21 {offsets = [2, 0, 0], sizes = [8, 16, 128], strides = [1, 1, 1]} : vector<10x16x128xf32> to vector<8x16x128xf32>
    %78 = vector.broadcast %41 : vector<1x1x128xf32> to vector<8x16x128xf32>
    %79 = arith.mulf %77, %78 : vector<8x16x128xf32>
    %80 = arith.addf %76, %79 : vector<8x16x128xf32>
    %81 = vector.extract_strided_slice %26 {offsets = [2, 0, 0], sizes = [8, 16, 128], strides = [1, 1, 1]} : vector<10x16x128xf32> to vector<8x16x128xf32>
    %82 = vector.broadcast %45 : vector<1x1x128xf32> to vector<8x16x128xf32>
    %83 = arith.mulf %81, %82 : vector<8x16x128xf32>
    %84 = arith.addf %80, %83 : vector<8x16x128xf32>
    %c0_22 = arith.constant 0 : index
    %c0_23 = arith.constant 0 : index
    %c0_24 = arith.constant 0 : index
    %c0_25 = arith.constant 0 : index
    %85 = vector.load %arg7[%c0_22, %c0_23, %c0_24, %c0_25] : memref<1x8x16x128xf32, #tpu.memory_space<vmem>>, vector<1x8x16x128xf32>
    %86 = vector.shape_cast %85 : vector<1x8x16x128xf32> to vector<8x16x128xf32>
    %87 = vector.shape_cast %84 : vector<8x16x128xf32> to vector<1x8x16x128xf32>
    tpu.vector_store %arg7[%c0_22, %c0_23, %c0_24, %c0_25], %87 {strides = array<i32>} : memref<1x8x16x128xf32, #tpu.memory_space<vmem>>, vector<1x8x16x128xf32>,
    return
  }
  func.func @transform_0(%arg0: i32, %arg1: i32) -> (i32, i32, i32, i32) {
    %c0_i32 = arith.constant 0 : i32
    %c0_i32_0 = arith.constant 0 : i32
    %c0_i32_1 = arith.constant 0 : i32
    return %arg0, %arg1, %c0_i32, %c0_i32_0 : i32, i32, i32, i32
  }
  func.func @transform_1(%arg0: i32, %arg1: i32) -> (i32, i32, i32, i32) {
    %c8_i32 = arith.constant 8 : i32
    %0 = arith.muli %arg1, %c8_i32 : i32
    %c1_i32 = arith.constant 1 : i32
    %1 = arith.subi %0, %c1_i32 : i32
    %c0_i32 = arith.constant 0 : i32
    %2 = arith.maxsi %1, %c0_i32 : i32
    %c0_i32_0 = arith.constant 0 : i32
    %c0_i32_1 = arith.constant 0 : i32
    %c0_i32_2 = arith.constant 0 : i32
    return %arg0, %2, %c0_i32_0, %c0_i32_1 : i32, i32, i32, i32
  }
  func.func @transform_2(%arg0: i32, %arg1: i32) -> (i32, i32, i32, i32) {
    %c1_i32 = arith.constant 1 : i32
    %0 = arith.addi %arg1, %c1_i32 : i32
    %c8_i32 = arith.constant 8 : i32
    %1 = arith.muli %0, %c8_i32 : i32
    %c15_i32 = arith.constant 15 : i32
    %2 = arith.minsi %1, %c15_i32 : i32
    %c0_i32 = arith.constant 0 : i32
    %c0_i32_0 = arith.constant 0 : i32
    %c0_i32_1 = arith.constant 0 : i32
    return %arg0, %2, %c0_i32, %c0_i32_0 : i32, i32, i32, i32
  }
  func.func @transform_3(%arg0: i32, %arg1: i32) -> (i32, i32) {
    %c0_i32 = arith.constant 0 : i32
    %c0_i32_0 = arith.constant 0 : i32
    %c0_i32_1 = arith.constant 0 : i32
    return %c0_i32, %c0_i32_0 : i32, i32
  }
  func.func @transform_4(%arg0: i32, %arg1: i32) -> (i32, i32) {
    %c0_i32 = arith.constant 0 : i32
    %c0_i32_0 = arith.constant 0 : i32
    %c0_i32_1 = arith.constant 0 : i32
    return %c0_i32, %c0_i32_0 : i32, i32
  }
  func.func @transform_5(%arg0: i32, %arg1: i32) -> (i32, i32, i32, i32) {
    %c0_i32 = arith.constant 0 : i32
    %c0_i32_0 = arith.constant 0 : i32
    %c0_i32_1 = arith.constant 0 : i32
    return %arg0, %arg1, %c0_i32, %c0_i32_0 : i32, i32, i32, i32
  }
}

</mosaic_0001>

<llo_original>
// kernel: _lambda_.1
$region0: #{_lambda_.1}
  #allocation0 [shape = 'u32[]', space=smem, size = 0x4, offset = 0x4, fixed_abs, tag = 'smem constant byte address 0x4 - core index']
  #allocation1 [shape = 'u32[144,128]{1,0:T(1,128)}', space=vmem, size = 0x12000, scoped, tag = 'internal scratch']
  #allocation2 [shape = 'f32[10,16,128]{2,1,0:T(8,128)}', space=vmem, size = 0x14000, scoped, tag = 'scratch operand']
  %s0 = inlined_call_operand.hbm [shape: f32[2,16,16,128], index: 0, kind: input, shape index: {}, may-alias: {0,1,2}]
  %s1 = inlined_call_operand.hbm [shape: f32[2,16,16,128], index: 1, kind: input, shape index: {}, may-alias: {0,1,2}]
  %s2 = inlined_call_operand.hbm [shape: f32[2,16,16,128], index: 2, kind: input, shape index: {}, may-alias: {0,1,2}]
  %s3 = inlined_call_operand.vmem [shape: f32[9,128], index: 3, kind: input, shape index: {}]
  %s4 = inlined_call_operand.vmem [shape: f32[1,128], index: 4, kind: input, shape index: {}]
  %s5 = inlined_call_operand.hbm [shape: f32[2,16,16,128], index: 5, kind: output, shape index: {}]
  %s6 = sld [smem:[#allocation0]]
  $region81: #{_lambda_.1} parent=0
    _
  %s8 = ssub.s32 1, %s6
  %s9 = scalar_select 0, %s8, %s6
  $region1: #{_lambda_.1} parent=0
    #allocation3 [shape = 'u8[131072]{0}', space=vmem, size = 0x20000, scoped, tag = 'input window, operand 0']
    #allocation4 [shape = 's32[2]{0}', space=sflag, size = 0x8, scoped, tag = 'scoped memory for _lambda_.1']
    #allocation5 [shape = 's32[2]{0}', space=sflag, size = 0x8, scoped, tag = 'scoped memory for _lambda_.1']
    #allocation6 [shape = 'u8[16384]{0}', space=vmem, size = 0x4000, scoped, tag = 'input window, operand 1']
    #allocation7 [shape = 's32[2]{0}', space=sflag, size = 0x8, scoped, tag = 'scoped memory for _lambda_.1']
    #allocation8 [shape = 'u8[16384]{0}', space=vmem, size = 0x4000, scoped, tag = 'input window, operand 2']
    #allocation9 [shape = 'u8[131072]{0}', space=vmem, size = 0x20000, scoped, tag = 'output window, operand 0']
    %10 = vsyncpa [#allocation4], 0
    %s11 = scalar_lea.sflag [#allocation4], 1
    %12 = vsyncpa %s11, 0
    %13 = vsyncpa [#allocation7], 0
    %s14 = scalar_lea.sflag [#allocation7], 1
    %15 = vsyncpa %s14, 0
    %16 = vsyncpa [#allocation5], 0
    %s17 = scalar_lea.sflag [#allocation5], 1
    %18 = vsyncpa %s17, 0
    loop: start=0, step=1, limit=6
    $region2: #{_lambda_.1} parent=1 // loop_pre_header
      _
    $region3: #{_lambda_.1} parent=1 // loop_header
      %s20 = sphi 0, %s24
      %p21 = scmp.ge.s32.totalorder %s20, 6
      %s27 = sphi 0, %s39
      %s28 = sphi 0, %s35
      %s29 = sphi 0, %s27
      %s30 = sphi 0, %s28
      %s31 = sphi 0, %s29
      %s32 = sphi 0, %s30
      %s44 = sphi 0, %s46
      %s47 = sphi 0, %s44
      %s48 = sphi 0, %s47
      %s64 = sphi 0, %s48
      %s80 = sphi 0, %s82
      %s83 = sphi 0, %s80
      %s84 = sphi 0, %s83
      %s100 = sphi 0, %s84
      %s116 = sphi 0, %s118
      %s119 = sphi 0, %s116
      %s120 = sphi 0, %s119
      %s136 = sphi 0, %s120
      %s140 = sphi 0, %s140
      %s142 = sphi 0, %s140
      %s143 = sphi 0, %s142
      %s157 = sphi 0, %s143
      %s161 = sphi 0, %s161
      %s163 = sphi 0, %s161
      %s164 = sphi 0, %s163
      %s178 = sphi 0, %s164
      %s186 = sphi 0, %s188
      %s189 = sphi 0, %s186
      %s190 = sphi 0, %s189
      %s206 = sphi 0, %s190
    $region4: #{_lambda_.1} parent=1 // loop_header_branch
      %23 = sbr.rel (%p21) target = $region8
    $region5: #{_lambda_.1} parent=1 // loop_body
      %s25 = ssub.s32 %s20, 1
      %s26 = ssub.s32 %s20, 2
      %s33 = sadd.s32 1, %s28
      %p34 = scmp.ge.s32.totalorder %s33, 2
      %s35 = scalar_select %p34, 0, %s33
      %s36 = sadd.s32 1, %s27
      %s37 = scalar_select %p34, %s36, %s27
      %p38 = scmp.ge.s32.totalorder %s37, 2
      %s39 = scalar_select %p38, 0, %s37
      %s40 = ssub.s32 %s27, %s39
      %s41 = ssub.s32 %s28, %s35
      %s42 = sor.u32 %s40, %s41
      %p43 = scmp.eq.s32.totalorder %s42, 0
      %s45 = sadd.s32 %s44, 1
      %s46 = scalar_select %p43, %s44, %s45
      %p49 = pneg %p43
      %p50 = scmp.eq.s32.totalorder %s20, 3
      %p51 = por %p49, %p50
      %p52 = scmp.ne.s32.totalorder %s44, %s47
      %p53 = scmp.eq.s32.totalorder %s20, 0
      %p54 = por %p52, %p53
      %p55 = scmp.ne.s32.totalorder %s44, %s47
      %p56 = scmp.eq.s32.totalorder %s25, 3
      %p57 = por %p55, %p56
      %p58 = scmp.ne.s32.totalorder %s47, %s48
      %p59 = scmp.eq.s32.totalorder %s25, 0
      %p60 = por %p58, %p59
      %p61 = scmp.ne.s32.totalorder %s47, %s48
      %p62 = scmp.eq.s32.totalorder %s26, 3
      %p63 = por %p61, %p62
      %p65 = scmp.ne.s32.totalorder %s48, %s64
      %p66 = scmp.eq.s32.totalorder %s26, 0
      %p67 = por %p65, %p66
      %s68 = smul.u32 %s28, 8
      %s69 = ssub.s32 %s68, 1
      %p70 = scmp.gt.s32.totalorder %s69, 0
      %s71 = scalar_select %p70, %s69, 0
      %s72 = smul.u32 %s35, 8
      %s73 = ssub.s32 %s72, 1
      %p74 = scmp.gt.s32.totalorder %s73, 0
      %s75 = scalar_select %p74, %s73, 0
      %s76 = ssub.s32 %s27, %s39
      %s77 = ssub.s32 %s71, %s75
      %s78 = sor.u32 %s76, %s77
      %p79 = scmp.eq.s32.totalorder %s78, 0
      %s81 = sadd.s32 %s80, 1
      %s82 = scalar_select %p79, %s80, %s81
      %p85 = pneg %p79
      %p86 = scmp.eq.s32.totalorder %s20, 3
      %p87 = por %p85, %p86
      %p88 = scmp.ne.s32.totalorder %s80, %s83
      %p89 = scmp.eq.s32.totalorder %s20, 0
      %p90 = por %p88, %p89
      %p91 = scmp.ne.s32.totalorder %s80, %s83
      %p92 = scmp.eq.s32.totalorder %s25, 3
      %p93 = por %p91, %p92
      %p94 = scmp.ne.s32.totalorder %s83, %s84
      %p95 = scmp.eq.s32.totalorder %s25, 0
      %p96 = por %p94, %p95
      %p97 = scmp.ne.s32.totalorder %s83, %s84
      %p98 = scmp.eq.s32.totalorder %s26, 3
      %p99 = por %p97, %p98
      %p101 = scmp.ne.s32.totalorder %s84, %s100
      %p102 = scmp.eq.s32.totalorder %s26, 0
      %p103 = por %p101, %p102
      %s104 = sadd.s32 %s28, 1
      %s105 = smul.u32 %s104, 8
      %p106 = scmp.lt.s32.totalorder %s105, 15
      %s107 = scalar_select %p106, %s105, 15
      %s108 = sadd.s32 %s35, 1
      %s109 = smul.u32 %s108, 8
      %p110 = scmp.lt.s32.totalorder %s109, 15
      %s111 = scalar_select %p110, %s109, 15
      %s112 = ssub.s32 %s27, %s39
      %s113 = ssub.s32 %s107, %s111
      %s114 = sor.u32 %s112, %s113
      %p115 = scmp.eq.s32.totalorder %s114, 0
      %s117 = sadd.s32 %s116, 1
      %s118 = scalar_select %p115, %s116, %s117
      %p121 = pneg %p115
      %p122 = scmp.eq.s32.totalorder %s20, 3
      %p123 = por %p121, %p122
      %p124 = scmp.ne.s32.totalorder %s116, %s119
      %p125 = scmp.eq.s32.totalorder %s20, 0
      %p126 = por %p124, %p125
      %p127 = scmp.ne.s32.totalorder %s116, %s119
      %p128 = scmp.eq.s32.totalorder %s25, 3
      %p129 = por %p127, %p128
      %p130 = scmp.ne.s32.totalorder %s119, %s120
      %p131 = scmp.eq.s32.totalorder %s25, 0
      %p132 = por %p130, %p131
      %p133 = scmp.ne.s32.totalorder %s119, %s120
      %p134 = scmp.eq.s32.totalorder %s26, 3
      %p135 = por %p133, %p134
      %p137 = scmp.ne.s32.totalorder %s120, %s136
      %p138 = scmp.eq.s32.totalorder %s26, 0
      %p139 = por %p137, %p138
      %s141 = sadd.s32 %s140, 1
      %p144 = scmp.eq.s32.totalorder %s20, 3
      %p145 = scmp.ne.s32.totalorder %s140, %s142
      %p146 = scmp.eq.s32.totalorder %s20, 0
      %p147 = por %p145, %p146
      %p148 = scmp.ne.s32.totalorder %s140, %s142
      %p149 = scmp.eq.s32.totalorder %s25, 3
      %p150 = por %p148, %p149
      %p151 = scmp.ne.s32.totalorder %s142, %s143
      %p152 = scmp.eq.s32.totalorder %s25, 0
      %p153 = por %p151, %p152
      %p154 = scmp.ne.s32.totalorder %s142, %s143
      %p155 = scmp.eq.s32.totalorder %s26, 3
      %p156 = por %p154, %p155
      %p158 = scmp.ne.s32.totalorder %s143, %s157
      %p159 = scmp.eq.s32.totalorder %s26, 0
      %p160 = por %p158, %p159
      %s162 = sadd.s32 %s161, 1
      %p165 = scmp.eq.s32.totalorder %s20, 3
      %p166 = scmp.ne.s32.totalorder %s161, %s163
      %p167 = scmp.eq.s32.totalorder %s20, 0
      %p168 = por %p166, %p167
      %p169 = scmp.ne.s32.totalorder %s161, %s163
      %p170 = scmp.eq.s32.totalorder %s25, 3
      %p171 = por %p169, %p170
      %p172 = scmp.ne.s32.totalorder %s163, %s164
      %p173 = scmp.eq.s32.totalorder %s25, 0
      %p174 = por %p172, %p173
      %p175 = scmp.ne.s32.totalorder %s163, %s164
      %p176 = scmp.eq.s32.totalorder %s26, 3
      %p177 = por %p175, %p176
      %p179 = scmp.ne.s32.totalorder %s164, %s178
      %p180 = scmp.eq.s32.totalorder %s26, 0
      %p181 = por %p179, %p180
      %s182 = ssub.s32 %s27, %s39
      %s183 = ssub.s32 %s28, %s35
      %s184 = sor.u32 %s182, %s183
      %p185 = scmp.eq.s32.totalorder %s184, 0
      %s187 = sadd.s32 %s186, 1
      %s188 = scalar_select %p185, %s186, %s187
      %p191 = pneg %p185
      %p192 = scmp.eq.s32.totalorder %s20, 3
      %p193 = por %p191, %p192
      %p194 = scmp.ne.s32.totalorder %s186, %s189
      %p195 = scmp.eq.s32.totalorder %s20, 0
      %p196 = por %p194, %p195
      %p197 = scmp.ne.s32.totalorder %s186, %s189
      %p198 = scmp.eq.s32.totalorder %s25, 3
      %p199 = por %p197, %p198
      %p200 = scmp.ne.s32.totalorder %s189, %s190
      %p201 = scmp.eq.s32.totalorder %s25, 0
      %p202 = por %p200, %p201
      %p203 = scmp.ne.s32.totalorder %s189, %s190
      %p204 = scmp.eq.s32.totalorder %s26, 3
      %p205 = por %p203, %p204
      %p207 = scmp.ne.s32.totalorder %s190, %s206
      %p208 = scmp.eq.s32.totalorder %s26, 0
      %p209 = por %p207, %p208
      %p210 = scmp.le.s32.totalorder 1, %s20
      %p211 = scmp.lt.s32.totalorder %s20, 5
      %p212 = pnand %p210, %p211
      %p213 = pneg %p212
      // Predicated region
      $region9: #{_lambda_.1} parent=5 // pred_check
        _
      $region10: #{_lambda_.1} parent=5 // pred_check_branch
        %215 = sbr.rel (%p212) target = $region12
      $region11: #{_lambda_.1} parent=5 // pred_region
        %s216 = ssub.s32 %s20, 1
        // Predicated region
        $region13: #{_lambda_.1} parent=11 // pred_check
          %p217 = pneg %p153
        $region14: #{_lambda_.1} parent=11 // pred_check_branch
          %219 = sbr.rel (%p217) target = $region16
        $region15: #{_lambda_.1} parent=11 // pred_region
          _
        $region16: #{_lambda_.1} parent=11 // pred_fallthru
          _
        // Predicated region
        $region17: #{_lambda_.1} parent=11 // pred_check
          %p220 = pneg %p174
        $region18: #{_lambda_.1} parent=11 // pred_check_branch
          %222 = sbr.rel (%p220) target = $region20
        $region19: #{_lambda_.1} parent=11 // pred_region
          _
        $region20: #{_lambda_.1} parent=11 // pred_fallthru
          _
      $region12: #{_lambda_.1} parent=5 // pred_fallthru
        _
      %p223 = scmp.lt.s32.totalorder %s20, 4
      // Predicated region
      $region21: #{_lambda_.1} parent=5 // pred_check
        %p224 = pneg %p223
      $region22: #{_lambda_.1} parent=5 // pred_check_branch
        %226 = sbr.rel (%p224) target = $region24
      $region23: #{_lambda_.1} parent=5 // pred_region
        // Predicated region
        $region25: #{_lambda_.1} parent=23 // pred_check
          %p227 = pneg %p54
        $region26: #{_lambda_.1} parent=23 // pred_check_branch
          %229 = sbr.rel (%p227) target = $region28
        $region27: #{_lambda_.1} parent=23 // pred_region
          %s230 = sand.u32 %s44, 1
          %s231 = scalar_lea.sflag [#allocation4], %s230
          %s232 = sand.u32 %s44, 1
          %s233 = smul.addr %s232, 128
          %s234 = scalar_lea.vmem [#allocation3], %s233
          %s235 = smul.u32 8, %s28
          %s237 = ssub.s32 2048, 2048
          %238 = vsyncadd %s231, %s237
          %s239 = smul.addr %s235, 2
          %s240 = smul.addr %s27, 32
          %s241 = sadd.s32 %s239, %s240
          %s242 = smul.addr %s241, 128
          %s243 = scalar_lea.hbm %s0, %s242
          %s244 = sshll.u32 %s234, 4
          %s245 = int_to_ptr.vmem [resolvable:$true] %s244
          %250 = dma.hbm_to_vmem [thread:$0]  %s243, 2048, %s245, %s231, 128, 128, 8
        $region28: #{_lambda_.1} parent=23 // pred_fallthru
          _
        // Predicated region
        $region29: #{_lambda_.1} parent=23 // pred_check
          %p251 = pneg %p90
        $region30: #{_lambda_.1} parent=23 // pred_check_branch
          %253 = sbr.rel (%p251) target = $region32
        $region31: #{_lambda_.1} parent=23 // pred_region
          %s254 = sand.u32 %s20, 1
          %s255 = scalar_lea.sflag [#allocation7], %s254
          %s256 = sand.u32 %s80, 1
          %s257 = smul.addr %s256, 16
          %s258 = scalar_lea.vmem [#allocation6], %s257
          %s259 = smul.u32 %s28, 8
          %s260 = ssub.s32 %s259, 1
          %p261 = scmp.gt.s32.totalorder %s260, 0
          %s262 = scalar_select %p261, %s260, 0
          %s264 = ssub.s32 256, 256
          %265 = vsyncadd %s255, %s264
          %s266 = smul.addr %s262, 2
          %s267 = smul.addr %s27, 32
          %s268 = sadd.s32 %s266, %s267
          %s269 = smul.addr %s268, 128
          %s270 = scalar_lea.hbm %s1, %s269
          %s271 = sshll.u32 %s258, 4
          %s272 = int_to_ptr.vmem [resolvable:$true] %s271
          %277 = dma.hbm_to_vmem [thread:$0]  %s270, 256, %s272, %s255, 128, 128, 8
        $region32: #{_lambda_.1} parent=23 // pred_fallthru
          _
        // Predicated region
        $region33: #{_lambda_.1} parent=23 // pred_check
          %p278 = pneg %p126
        $region34: #{_lambda_.1} parent=23 // pred_check_branch
          %280 = sbr.rel (%p278) target = $region36
        $region35: #{_lambda_.1} parent=23 // pred_region
          %s281 = sand.u32 %s20, 1
          %s282 = scalar_lea.sflag [#allocation7], %s281
          %s283 = sand.u32 %s116, 1
          %s284 = smul.addr %s283, 16
          %s285 = scalar_lea.vmem [#allocation8], %s284
          %s286 = sadd.s32 %s28, 1
          %s287 = smul.u32 %s286, 8
          %p288 = scmp.lt.s32.totalorder %s287, 15
          %s289 = scalar_select %p288, %s287, 15
          %s291 = ssub.s32 256, 256
          %292 = vsyncadd %s282, %s291
          %s293 = smul.addr %s289, 2
          %s294 = smul.addr %s27, 32
          %s295 = sadd.s32 %s293, %s294
          %s296 = smul.addr %s295, 128
          %s297 = scalar_lea.hbm %s2, %s296
          %s298 = sshll.u32 %s285, 4
          %s299 = int_to_ptr.vmem [resolvable:$true] %s298
          %304 = dma.hbm_to_vmem [thread:$0]  %s297, 256, %s299, %s282, 128, 128, 8
        $region36: #{_lambda_.1} parent=23 // pred_fallthru
          _
      $region24: #{_lambda_.1} parent=5 // pred_fallthru
        _
      %p305 = scmp.le.s32.totalorder 1, %s20
      %p306 = scmp.lt.s32.totalorder %s20, 5
      %p307 = pnand %p305, %p306
      %p308 = pneg %p307
      // Predicated region
      $region37: #{_lambda_.1} parent=5 // pred_check
        _
      $region38: #{_lambda_.1} parent=5 // pred_check_branch
        %310 = sbr.rel (%p307) target = $region40
      $region39: #{_lambda_.1} parent=5 // pred_region
        %s311 = ssub.s32 %s20, 1
        %s312 = sand.u32 %s47, 1
        %s313 = scalar_lea.sflag [#allocation4], %s312
        %s314 = sand.u32 %s47, 1
        %s315 = smul.addr %s314, 128
        %s316 = scalar_lea.vmem [#allocation3], %s315
        // Predicated region
        $region41: #{_lambda_.1} parent=39 // pred_check
          %p317 = pneg %p60
        $region42: #{_lambda_.1} parent=39 // pred_check_branch
          %319 = sbr.rel (%p317) target = $region44
        $region43: #{_lambda_.1} parent=39 // pred_region
          %320 = dma.done %s313, 2048
        $region44: #{_lambda_.1} parent=39 // pred_fallthru
          _
        %s321 = sand.u32 %s25, 1
        %s322 = scalar_lea.sflag [#allocation7], %s321
        %s323 = sand.u32 %s83, 1
        %s324 = smul.addr %s323, 16
        %s325 = scalar_lea.vmem [#allocation6], %s324
        // Predicated region
        $region45: #{_lambda_.1} parent=39 // pred_check
          %p326 = pneg %p96
        $region46: #{_lambda_.1} parent=39 // pred_check_branch
          %328 = sbr.rel (%p326) target = $region48
        $region47: #{_lambda_.1} parent=39 // pred_region
          %329 = dma.done %s322, 256
        $region48: #{_lambda_.1} parent=39 // pred_fallthru
          _
        %s330 = sand.u32 %s25, 1
        %s331 = scalar_lea.sflag [#allocation7], %s330
        %s332 = sand.u32 %s119, 1
        %s333 = smul.addr %s332, 16
        %s334 = scalar_lea.vmem [#allocation8], %s333
        // Predicated region
        $region49: #{_lambda_.1} parent=39 // pred_check
          %p335 = pneg %p132
        $region50: #{_lambda_.1} parent=39 // pred_check_branch
          %337 = sbr.rel (%p335) target = $region52
        $region51: #{_lambda_.1} parent=39 // pred_region
          %338 = dma.done %s331, 256
        $region52: #{_lambda_.1} parent=39 // pred_fallthru
          _
        %s339 = sand.u32 %s47, 1
        %s340 = scalar_lea.sflag [#allocation4], %s339
        %s341 = sand.u32 %s47, 1
        %s342 = smul.addr %s341, 128
        %s343 = scalar_lea.vmem [#allocation3], %s342
        %p344 = pneg %p60
        %p345 = pneg %p57
        %s346 = sand.u32 %s25, 1
        %s347 = scalar_lea.sflag [#allocation7], %s346
        %s348 = sand.u32 %s83, 1
        %s349 = smul.addr %s348, 16
        %s350 = scalar_lea.vmem [#allocation6], %s349
        %p351 = pneg %p96
        %p352 = pneg %p93
        %s353 = sand.u32 %s25, 1
        %s354 = scalar_lea.sflag [#allocation7], %s353
        %s355 = sand.u32 %s119, 1
        %s356 = smul.addr %s355, 16
        %s357 = scalar_lea.vmem [#allocation8], %s356
        %p358 = pneg %p132
        %p359 = pneg %p129
        %p360 = pneg %p153
        %p361 = pneg %p150
        %p362 = pneg %p174
        %p363 = pneg %p171
        %p364 = pneg %p202
        %p365 = pneg %p199
        %s366 = sand.u32 %s189, 1
        %s367 = scalar_lea.sflag [#allocation5], %s366
        %s368 = sand.u32 %s189, 1
        %s369 = smul.addr %s368, 128
        %s370 = scalar_lea.vmem [#allocation9], %s369
        %s371 = smul.u32 8, %s30
        %s372 = smul.u32 %s30, 8
        %s373 = ssub.s32 %s372, 1
        %p374 = scmp.gt.s32.totalorder %s373, 0
        %s375 = scalar_select %p374, %s373, 0
        %s376 = sadd.s32 %s30, 1
        %s377 = smul.u32 %s376, 8
        %p378 = scmp.lt.s32.totalorder %s377, 15
        %s379 = scalar_select %p378, %s377, 15
        %s380 = smul.u32 8, %s30
        %v381 = vld [vmem:[%s316] sm:$0xff]
        %v382 = vld [vmem:[%s316 + $0x8] sm:$0xff]
        %v383 = vld [vmem:[%s316 + $0x10] sm:$0xff]
        %v384 = vld [vmem:[%s316 + $0x18] sm:$0xff]
        %v385 = vld [vmem:[%s316 + $0x20] sm:$0xff]
        %v386 = vld [vmem:[%s316 + $0x28] sm:$0xff]
        %v387 = vld [vmem:[%s316 + $0x30] sm:$0xff]
        %v388 = vld [vmem:[%s316 + $0x38] sm:$0xff]
        %v389 = vld [vmem:[%s316 + $0x40] sm:$0xff]
        %v390 = vld [vmem:[%s316 + $0x48] sm:$0xff]
        %v391 = vld [vmem:[%s316 + $0x50] sm:$0xff]
        %v392 = vld [vmem:[%s316 + $0x58] sm:$0xff]
        %v393 = vld [vmem:[%s316 + $0x60] sm:$0xff]
        %v394 = vld [vmem:[%s316 + $0x68] sm:$0xff]
        %v395 = vld [vmem:[%s316 + $0x70] sm:$0xff]
        %v396 = vld [vmem:[%s316 + $0x78] sm:$0xff]
        %s397 = scalar_lea.vmem [#allocation2], 16
        %398 = vst [vmem:[%s397] sm:$0xff] %v381
        %399 = vst [vmem:[%s397 + $0x8] sm:$0xff] %v382
        %400 = vst [vmem:[%s397 + $0x10] sm:$0xff] %v383
        %401 = vst [vmem:[%s397 + $0x18] sm:$0xff] %v384
        %402 = vst [vmem:[%s397 + $0x20] sm:$0xff] %v385
        %403 = vst [vmem:[%s397 + $0x28] sm:$0xff] %v386
        %404 = vst [vmem:[%s397 + $0x30] sm:$0xff] %v387
        %405 = vst [vmem:[%s397 + $0x38] sm:$0xff] %v388
        %406 = vst [vmem:[%s397 + $0x40] sm:$0xff] %v389
        %407 = vst [vmem:[%s397 + $0x48] sm:$0xff] %v390
        %408 = vst [vmem:[%s397 + $0x50] sm:$0xff] %v391
        %409 = vst [vmem:[%s397 + $0x58] sm:$0xff] %v392
        %410 = vst [vmem:[%s397 + $0x60] sm:$0xff] %v393
        %411 = vst [vmem:[%s397 + $0x68] sm:$0xff] %v394
        %412 = vst [vmem:[%s397 + $0x70] sm:$0xff] %v395
        %413 = vst [vmem:[%s397 + $0x78] sm:$0xff] %v396
        %p414 = scmp.eq.s32.totalorder %s30, 0
        // Predicated region
        $region53: #{_lambda_.1} parent=39 // pred_check
          %p415 = pneg %p414
        $region54: #{_lambda_.1} parent=39 // pred_check_branch
          %417 = sbr.rel (%p415) target = $region56
        $region55: #{_lambda_.1} parent=39 // pred_region
          %418 = vst [vmem:[#allocation2] sm:$0xff] 0.0
          %419 = vst [vmem:[#allocation2 + $0x8] sm:$0xff] 0.0
        $region56: #{_lambda_.1} parent=39 // pred_fallthru
          _
        %p420 = scmp.gt.s32.totalorder %s30, 0
        // Predicated region
        $region57: #{_lambda_.1} parent=39 // pred_check
          %p421 = pneg %p420
        $region58: #{_lambda_.1} parent=39 // pred_check_branch
          %423 = sbr.rel (%p421) target = $region60
        $region59: #{_lambda_.1} parent=39 // pred_region
          %v424 = vld [vmem:[%s325] sm:$0xff]
          %v425 = vld [vmem:[%s325 + $0x8] sm:$0xff]
          %426 = vst [vmem:[#allocation2] sm:$0xff] %v424
          %427 = vst [vmem:[#allocation2 + $0x8] sm:$0xff] %v425
        $region60: #{_lambda_.1} parent=39 // pred_fallthru
          _
        %p428 = scmp.eq.s32.totalorder %s30, 1
        // Predicated region
        $region61: #{_lambda_.1} parent=39 // pred_check
          %p429 = pneg %p428
        $region62: #{_lambda_.1} parent=39 // pred_check_branch
          %431 = sbr.rel (%p429) target = $region64
        $region63: #{_lambda_.1} parent=39 // pred_region
          %s432 = scalar_lea.vmem [#allocation2], 144
          %433 = vst [vmem:[%s432] sm:$0xff] 0.0
          %434 = vst [vmem:[%s432 + $0x8] sm:$0xff] 0.0
        $region64: #{_lambda_.1} parent=39 // pred_fallthru
          _
        %p435 = scmp.lt.s32.totalorder %s30, 1
        // Predicated region
        $region65: #{_lambda_.1} parent=39 // pred_check
          %p436 = pneg %p435
        $region66: #{_lambda_.1} parent=39 // pred_check_branch
          %438 = sbr.rel (%p436) target = $region68
        $region67: #{_lambda_.1} parent=39 // pred_region
          %v439 = vld [vmem:[%s334] sm:$0xff]
          %v440 = vld [vmem:[%s334 + $0x8] sm:$0xff]
          %s441 = scalar_lea.vmem [#allocation2], 144
          %442 = vst [vmem:[%s441] sm:$0xff] %v439
          %443 = vst [vmem:[%s441 + $0x8] sm:$0xff] %v440
        $region68: #{_lambda_.1} parent=39 // pred_fallthru
          _
        %v444 = vld [vmem:[#allocation2] sm:$0xff]
        %v445 = vld [vmem:[#allocation2 + $0x8] sm:$0xff]
        %v446 = vld [vmem:[#allocation2 + $0x10] sm:$0xff]
        %v447 = vld [vmem:[#allocation2 + $0x18] sm:$0xff]
        %v448 = vld [vmem:[#allocation2 + $0x20] sm:$0xff]
        %v449 = vld [vmem:[#allocation2 + $0x28] sm:$0xff]
        %v450 = vld [vmem:[#allocation2 + $0x30] sm:$0xff]
        %v451 = vld [vmem:[#allocation2 + $0x38] sm:$0xff]
        %v452 = vld [vmem:[#allocation2 + $0x40] sm:$0xff]
        %v453 = vld [vmem:[#allocation2 + $0x48] sm:$0xff]
        %v454 = vld [vmem:[#allocation2 + $0x50] sm:$0xff]
        %v455 = vld [vmem:[#allocation2 + $0x58] sm:$0xff]
        %v456 = vld [vmem:[#allocation2 + $0x60] sm:$0xff]
        %v457 = vld [vmem:[#allocation2 + $0x68] sm:$0xff]
        %v458 = vld [vmem:[#allocation2 + $0x70] sm:$0xff]
        %v459 = vld [vmem:[#allocation2 + $0x78] sm:$0xff]
        %v460 = vld [vmem:[#allocation2 + $0x80] sm:$0xff]
        %v461 = vld [vmem:[#allocation2 + $0x88] sm:$0xff]
        %v462 = vld [vmem:[#allocation2 + $0x90] sm:$0xff]
        %v463 = vld [vmem:[#allocation2 + $0x98] sm:$0xff]
        %v464 = vlaneseq
        %v465 = vshrl.u32 %v464, 7
        %v466 = vadd.s32 %v465, 8
        %vm467 = vcmp.eq.s32.totalorder %v465, 0
        %vm468 = vcmp.eq.s32.totalorder %v466, 0
        %v469 = vrot.slane %v444, 7
        %v470 = vrot.slane %v446, 7
        %v471 = vrot.slane %v448, 7
        %v472 = vrot.slane %v450, 7
        %v473 = vrot.slane %v452, 7
        %v474 = vrot.slane %v454, 7
        %v475 = vrot.slane %v456, 7
        %v476 = vrot.slane %v458, 7
        %v477 = vrot.slane %v460, 7
        %v478 = vrot.slane %v462, 7
        %v479 = vrot.slane %v445, 7
        %v480 = vrot.slane %v447, 7
        %v481 = vrot.slane %v449, 7
        %v482 = vrot.slane %v451, 7
        %v483 = vrot.slane %v453, 7
        %v484 = vrot.slane %v455, 7
        %v485 = vrot.slane %v457, 7
        %v486 = vrot.slane %v459, 7
        %v487 = vrot.slane %v461, 7
        %v488 = vrot.slane %v463, 7
        %vm489 = vcmp.lt.s32.totalorder %v465, 1
        %v490 = vsel %vm489, %v469, %v479
        %v491 = vsel %vm489, %v470, %v480
        %v492 = vsel %vm489, %v471, %v481
        %v493 = vsel %vm489, %v472, %v482
        %v494 = vsel %vm489, %v473, %v483
        %v495 = vsel %vm489, %v474, %v484
        %v496 = vsel %vm489, %v475, %v485
        %v497 = vsel %vm489, %v476, %v486
        %v498 = vsel %vm489, %v477, %v487
        %v499 = vsel %vm489, %v478, %v488
        %v500 = vsel %vm489, %v479, %v469
        %v501 = vsel %vm489, %v480, %v470
        %v502 = vsel %vm489, %v481, %v471
        %v503 = vsel %vm489, %v482, %v472
        %v504 = vsel %vm489, %v483, %v473
        %v505 = vsel %vm489, %v484, %v474
        %v506 = vsel %vm489, %v485, %v475
        %v507 = vsel %vm489, %v486, %v476
        %v508 = vsel %vm489, %v487, %v477
        %v509 = vsel %vm489, %v488, %v478
        %v510 = vsel %vm467, 0.0, %v500
        %v511 = vsel %vm468, 0.0, %v490
        %v512 = vsel %vm467, 0.0, %v501
        %v513 = vsel %vm468, 0.0, %v491
        %v514 = vsel %vm467, 0.0, %v502
        %v515 = vsel %vm468, 0.0, %v492
        %v516 = vsel %vm467, 0.0, %v503
        %v517 = vsel %vm468, 0.0, %v493
        %v518 = vsel %vm467, 0.0, %v504
        %v519 = vsel %vm468, 0.0, %v494
        %v520 = vsel %vm467, 0.0, %v505
        %v521 = vsel %vm468, 0.0, %v495
        %v522 = vsel %vm467, 0.0, %v506
        %v523 = vsel %vm468, 0.0, %v496
        %v524 = vsel %vm467, 0.0, %v507
        %v525 = vsel %vm468, 0.0, %v497
        %v526 = vsel %vm467, 0.0, %v508
        %v527 = vsel %vm468, 0.0, %v498
        %v528 = vsel %vm467, 0.0, %v509
        %v529 = vsel %vm468, 0.0, %v499
        %vm530 = vcmp.eq.s32.totalorder %v465, 15
        %vm531 = vcmp.eq.s32.totalorder %v466, 15
        %v532 = vrot.slane %v444, 1
        %v533 = vrot.slane %v446, 1
        %v534 = vrot.slane %v448, 1
        %v535 = vrot.slane %v450, 1
        %v536 = vrot.slane %v452, 1
        %v537 = vrot.slane %v454, 1
        %v538 = vrot.slane %v456, 1
        %v539 = vrot.slane %v458, 1
        %v540 = vrot.slane %v460, 1
        %v541 = vrot.slane %v462, 1
        %v542 = vrot.slane %v445, 1
        %v543 = vrot.slane %v447, 1
        %v544 = vrot.slane %v449, 1
        %v545 = vrot.slane %v451, 1
        %v546 = vrot.slane %v453, 1
        %v547 = vrot.slane %v455, 1
        %v548 = vrot.slane %v457, 1
        %v549 = vrot.slane %v459, 1
        %v550 = vrot.slane %v461, 1
        %v551 = vrot.slane %v463, 1
        %vm552 = vcmp.lt.s32.totalorder %v465, 7
        %v553 = vsel %vm552, %v532, %v542
        %v554 = vsel %vm552, %v533, %v543
        %v555 = vsel %vm552, %v534, %v544
        %v556 = vsel %vm552, %v535, %v545
        %v557 = vsel %vm552, %v536, %v546
        %v558 = vsel %vm552, %v537, %v547
        %v559 = vsel %vm552, %v538, %v548
        %v560 = vsel %vm552, %v539, %v549
        %v561 = vsel %vm552, %v540, %v550
        %v562 = vsel %vm552, %v541, %v551
        %v563 = vsel %vm552, %v542, %v532
        %v564 = vsel %vm552, %v543, %v533
        %v565 = vsel %vm552, %v544, %v534
        %v566 = vsel %vm552, %v545, %v535
        %v567 = vsel %vm552, %v546, %v536
        %v568 = vsel %vm552, %v547, %v537
        %v569 = vsel %vm552, %v548, %v538
        %v570 = vsel %vm552, %v549, %v539
        %v571 = vsel %vm552, %v550, %v540
        %v572 = vsel %vm552, %v551, %v541
        %v573 = vsel %vm530, 0.0, %v553
        %v574 = vsel %vm531, 0.0, %v563
        %v575 = vsel %vm530, 0.0, %v554
        %v576 = vsel %vm531, 0.0, %v564
        %v577 = vsel %vm530, 0.0, %v555
        %v578 = vsel %vm531, 0.0, %v565
        %v579 = vsel %vm530, 0.0, %v556
        %v580 = vsel %vm531, 0.0, %v566
        %v581 = vsel %vm530, 0.0, %v557
        %v582 = vsel %vm531, 0.0, %v567
        %v583 = vsel %vm530, 0.0, %v558
        %v584 = vsel %vm531, 0.0, %v568
        %v585 = vsel %vm530, 0.0, %v559
        %v586 = vsel %vm531, 0.0, %v569
        %v587 = vsel %vm530, 0.0, %v560
        %v588 = vsel %vm531, 0.0, %v570
        %v589 = vsel %vm530, 0.0, %v561
        %v590 = vsel %vm531, 0.0, %v571
        %v591 = vsel %vm530, 0.0, %v562
        %v592 = vsel %vm531, 0.0, %v572
        %v593 = vld [vmem:[%s3] sm:$0xff]
        %v594 = vld [vmem:[%s3 + $0x8] sm:$0x1]
        %v595 = vld [vmem:[%s4] sm:$0x1]
        %v596 = vlaneseq
        %v597 = vshrl.u32 %v596, 7
        %v598 = vsub.s32 4, %v597
        %v599 = vrot.slane %v593, %v598
        %v600 = vmul.f32 %v446, %v599
        %v601 = vmul.f32 %v447, %v599
        %v602 = vmul.f32 %v448, %v599
        %v603 = vmul.f32 %v449, %v599
        %v604 = vmul.f32 %v450, %v599
        %v605 = vmul.f32 %v451, %v599
        %v606 = vmul.f32 %v452, %v599
        %v607 = vmul.f32 %v453, %v599
        %v608 = vmul.f32 %v454, %v599
        %v609 = vmul.f32 %v455, %v599
        %v610 = vmul.f32 %v456, %v599
        %v611 = vmul.f32 %v457, %v599
        %v612 = vmul.f32 %v458, %v599
        %v613 = vmul.f32 %v459, %v599
        %v614 = vmul.f32 %v460, %v599
        %v615 = vmul.f32 %v461, %v599
        %v617 = vlaneseq
        %v618 = vshrl.u32 %v617, 7
        %v619 = vsub.s32 0, %v618
        %v620 = vrot.slane %v595, %v619
        %v622 = vadd.f32 %v600, %v620
        %v623 = vadd.f32 %v601, %v620
        %v624 = vadd.f32 %v602, %v620
        %v625 = vadd.f32 %v603, %v620
        %v626 = vadd.f32 %v604, %v620
        %v627 = vadd.f32 %v605, %v620
        %v628 = vadd.f32 %v606, %v620
        %v629 = vadd.f32 %v607, %v620
        %v630 = vadd.f32 %v608, %v620
        %v631 = vadd.f32 %v609, %v620
        %v632 = vadd.f32 %v610, %v620
        %v633 = vadd.f32 %v611, %v620
        %v634 = vadd.f32 %v612, %v620
        %v635 = vadd.f32 %v613, %v620
        %v636 = vadd.f32 %v614, %v620
        %v637 = vadd.f32 %v615, %v620
        %v638 = vlaneseq
        %v639 = vshrl.u32 %v638, 7
        %v640 = vsub.s32 3, %v639
        %v641 = vrot.slane %v593, %v640
        %v642 = vmul.f32 %v512, %v641
        %v643 = vmul.f32 %v513, %v641
        %v644 = vmul.f32 %v514, %v641
        %v645 = vmul.f32 %v515, %v641
        %v646 = vmul.f32 %v516, %v641
        %v647 = vmul.f32 %v517, %v641
        %v648 = vmul.f32 %v518, %v641
        %v649 = vmul.f32 %v519, %v641
        %v650 = vmul.f32 %v520, %v641
        %v651 = vmul.f32 %v521, %v641
        %v652 = vmul.f32 %v522, %v641
        %v653 = vmul.f32 %v523, %v641
        %v654 = vmul.f32 %v524, %v641
        %v655 = vmul.f32 %v525, %v641
        %v656 = vmul.f32 %v526, %v641
        %v657 = vmul.f32 %v527, %v641
        %v658 = vadd.f32 %v622, %v642
        %v659 = vadd.f32 %v623, %v643
        %v660 = vadd.f32 %v624, %v644
        %v661 = vadd.f32 %v625, %v645
        %v662 = vadd.f32 %v626, %v646
        %v663 = vadd.f32 %v627, %v647
        %v664 = vadd.f32 %v628, %v648
        %v665 = vadd.f32 %v629, %v649
        %v666 = vadd.f32 %v630, %v650
        %v667 = vadd.f32 %v631, %v651
        %v668 = vadd.f32 %v632, %v652
        %v669 = vadd.f32 %v633, %v653
        %v670 = vadd.f32 %v634, %v654
        %v671 = vadd.f32 %v635, %v655
        %v672 = vadd.f32 %v636, %v656
        %v673 = vadd.f32 %v637, %v657
        %v674 = vlaneseq
        %v675 = vshrl.u32 %v674, 7
        %v676 = vsub.s32 5, %v675
        %v677 = vrot.slane %v593, %v676
        %v678 = vmul.f32 %v575, %v677
        %v679 = vmul.f32 %v576, %v677
        %v680 = vmul.f32 %v577, %v677
        %v681 = vmul.f32 %v578, %v677
        %v682 = vmul.f32 %v579, %v677
        %v683 = vmul.f32 %v580, %v677
        %v684 = vmul.f32 %v581, %v677
        %v685 = vmul.f32 %v582, %v677
        %v686 = vmul.f32 %v583, %v677
        %v687 = vmul.f32 %v584, %v677
        %v688 = vmul.f32 %v585, %v677
        %v689 = vmul.f32 %v586, %v677
        %v690 = vmul.f32 %v587, %v677
        %v691 = vmul.f32 %v588, %v677
        %v692 = vmul.f32 %v589, %v677
        %v693 = vmul.f32 %v590, %v677
        %v694 = vadd.f32 %v658, %v678
        %v695 = vadd.f32 %v659, %v679
        %v696 = vadd.f32 %v660, %v680
        %v697 = vadd.f32 %v661, %v681
        %v698 = vadd.f32 %v662, %v682
        %v699 = vadd.f32 %v663, %v683
        %v700 = vadd.f32 %v664, %v684
        %v701 = vadd.f32 %v665, %v685
        %v702 = vadd.f32 %v666, %v686
        %v703 = vadd.f32 %v667, %v687
        %v704 = vadd.f32 %v668, %v688
        %v705 = vadd.f32 %v669, %v689
        %v706 = vadd.f32 %v670, %v690
        %v707 = vadd.f32 %v671, %v691
        %v708 = vadd.f32 %v672, %v692
        %v709 = vadd.f32 %v673, %v693
        %v710 = vlaneseq
        %v711 = vshrl.u32 %v710, 7
        %v712 = vsub.s32 1, %v711
        %v713 = vrot.slane %v593, %v712
        %v714 = vmul.f32 %v444, %v713
        %v715 = vmul.f32 %v445, %v713
        %v716 = vmul.f32 %v446, %v713
        %v717 = vmul.f32 %v447, %v713
        %v718 = vmul.f32 %v448, %v713
        %v719 = vmul.f32 %v449, %v713
        %v720 = vmul.f32 %v450, %v713
        %v721 = vmul.f32 %v451, %v713
        %v722 = vmul.f32 %v452, %v713
        %v723 = vmul.f32 %v453, %v713
        %v724 = vmul.f32 %v454, %v713
        %v725 = vmul.f32 %v455, %v713
        %v726 = vmul.f32 %v456, %v713
        %v727 = vmul.f32 %v457, %v713
        %v728 = vmul.f32 %v458, %v713
        %v729 = vmul.f32 %v459, %v713
        %v730 = vadd.f32 %v694, %v714
        %v731 = vadd.f32 %v695, %v715
        %v732 = vadd.f32 %v696, %v716
        %v733 = vadd.f32 %v697, %v717
        %v734 = vadd.f32 %v698, %v718
        %v735 = vadd.f32 %v699, %v719
        %v736 = vadd.f32 %v700, %v720
        %v737 = vadd.f32 %v701, %v721
        %v738 = vadd.f32 %v702, %v722
        %v739 = vadd.f32 %v703, %v723
        %v740 = vadd.f32 %v704, %v724
        %v741 = vadd.f32 %v705, %v725
        %v742 = vadd.f32 %v706, %v726
        %v743 = vadd.f32 %v707, %v727
        %v744 = vadd.f32 %v708, %v728
        %v745 = vadd.f32 %v709, %v729
        %v746 = vlaneseq
        %v747 = vshrl.u32 %v746, 7
        %v748 = vsub.s32 0, %v747
        %v749 = vrot.slane %v593, %v748
        %v750 = vmul.f32 %v510, %v749
        %v751 = vmul.f32 %v511, %v749
        %v752 = vmul.f32 %v512, %v749
        %v753 = vmul.f32 %v513, %v749
        %v754 = vmul.f32 %v514, %v749
        %v755 = vmul.f32 %v515, %v749
        %v756 = vmul.f32 %v516, %v749
        %v757 = vmul.f32 %v517, %v749
        %v758 = vmul.f32 %v518, %v749
        %v759 = vmul.f32 %v519, %v749
        %v760 = vmul.f32 %v520, %v749
        %v761 = vmul.f32 %v521, %v749
        %v762 = vmul.f32 %v522, %v749
        %v763 = vmul.f32 %v523, %v749
        %v764 = vmul.f32 %v524, %v749
        %v765 = vmul.f32 %v525, %v749
        %v766 = vadd.f32 %v730, %v750
        %v767 = vadd.f32 %v731, %v751
        %v768 = vadd.f32 %v732, %v752
        %v769 = vadd.f32 %v733, %v753
        %v770 = vadd.f32 %v734, %v754
        %v771 = vadd.f32 %v735, %v755
        %v772 = vadd.f32 %v736, %v756
        %v773 = vadd.f32 %v737, %v757
        %v774 = vadd.f32 %v738, %v758
        %v775 = vadd.f32 %v739, %v759
        %v776 = vadd.f32 %v740, %v760
        %v777 = vadd.f32 %v741, %v761
        %v778 = vadd.f32 %v742, %v762
        %v779 = vadd.f32 %v743, %v763
        %v780 = vadd.f32 %v744, %v764
        %v781 = vadd.f32 %v745, %v765
        %v782 = vlaneseq
        %v783 = vshrl.u32 %v782, 7
        %v784 = vsub.s32 2, %v783
        %v785 = vrot.slane %v593, %v784
        %v786 = vmul.f32 %v573, %v785
        %v787 = vmul.f32 %v574, %v785
        %v788 = vmul.f32 %v575, %v785
        %v789 = vmul.f32 %v576, %v785
        %v790 = vmul.f32 %v577, %v785
        %v791 = vmul.f32 %v578, %v785
        %v792 = vmul.f32 %v579, %v785
        %v793 = vmul.f32 %v580, %v785
        %v794 = vmul.f32 %v581, %v785
        %v795 = vmul.f32 %v582, %v785
        %v796 = vmul.f32 %v583, %v785
        %v797 = vmul.f32 %v584, %v785
        %v798 = vmul.f32 %v585, %v785
        %v799 = vmul.f32 %v586, %v785
        %v800 = vmul.f32 %v587, %v785
        %v801 = vmul.f32 %v588, %v785
        %v802 = vadd.f32 %v766, %v786
        %v803 = vadd.f32 %v767, %v787
        %v804 = vadd.f32 %v768, %v788
        %v805 = vadd.f32 %v769, %v789
        %v806 = vadd.f32 %v770, %v790
        %v807 = vadd.f32 %v771, %v791
        %v808 = vadd.f32 %v772, %v792
        %v809 = vadd.f32 %v773, %v793
        %v810 = vadd.f32 %v774, %v794
        %v811 = vadd.f32 %v775, %v795
        %v812 = vadd.f32 %v776, %v796
        %v813 = vadd.f32 %v777, %v797
        %v814 = vadd.f32 %v778, %v798
        %v815 = vadd.f32 %v779, %v799
        %v816 = vadd.f32 %v780, %v800
        %v817 = vadd.f32 %v781, %v801
        %v818 = vlaneseq
        %v819 = vshrl.u32 %v818, 7
        %v820 = vsub.s32 7, %v819
        %v821 = vrot.slane %v593, %v820
        %v822 = vmul.f32 %v448, %v821
        %v823 = vmul.f32 %v449, %v821
        %v824 = vmul.f32 %v450, %v821
        %v825 = vmul.f32 %v451, %v821
        %v826 = vmul.f32 %v452, %v821
        %v827 = vmul.f32 %v453, %v821
        %v828 = vmul.f32 %v454, %v821
        %v829 = vmul.f32 %v455, %v821
        %v830 = vmul.f32 %v456, %v821
        %v831 = vmul.f32 %v457, %v821
        %v832 = vmul.f32 %v458, %v821
        %v833 = vmul.f32 %v459, %v821
        %v834 = vmul.f32 %v460, %v821
        %v835 = vmul.f32 %v461, %v821
        %v836 = vmul.f32 %v462, %v821
        %v837 = vmul.f32 %v463, %v821
        %v838 = vadd.f32 %v802, %v822
        %v839 = vadd.f32 %v803, %v823
        %v840 = vadd.f32 %v804, %v824
        %v841 = vadd.f32 %v805, %v825
        %v842 = vadd.f32 %v806, %v826
        %v843 = vadd.f32 %v807, %v827
        %v844 = vadd.f32 %v808, %v828
        %v845 = vadd.f32 %v809, %v829
        %v846 = vadd.f32 %v810, %v830
        %v847 = vadd.f32 %v811, %v831
        %v848 = vadd.f32 %v812, %v832
        %v849 = vadd.f32 %v813, %v833
        %v850 = vadd.f32 %v814, %v834
        %v851 = vadd.f32 %v815, %v835
        %v852 = vadd.f32 %v816, %v836
        %v853 = vadd.f32 %v817, %v837
        %v854 = vlaneseq
        %v855 = vshrl.u32 %v854, 7
        %v856 = vsub.s32 6, %v855
        %v857 = vrot.slane %v593, %v856
        %v858 = vmul.f32 %v514, %v857
        %v859 = vmul.f32 %v515, %v857
        %v860 = vmul.f32 %v516, %v857
        %v861 = vmul.f32 %v517, %v857
        %v862 = vmul.f32 %v518, %v857
        %v863 = vmul.f32 %v519, %v857
        %v864 = vmul.f32 %v520, %v857
        %v865 = vmul.f32 %v521, %v857
        %v866 = vmul.f32 %v522, %v857
        %v867 = vmul.f32 %v523, %v857
        %v868 = vmul.f32 %v524, %v857
        %v869 = vmul.f32 %v525, %v857
        %v870 = vmul.f32 %v526, %v857
        %v871 = vmul.f32 %v527, %v857
        %v872 = vmul.f32 %v528, %v857
        %v873 = vmul.f32 %v529, %v857
        %v874 = vadd.f32 %v838, %v858
        %v875 = vadd.f32 %v839, %v859
        %v876 = vadd.f32 %v840, %v860
        %v877 = vadd.f32 %v841, %v861
        %v878 = vadd.f32 %v842, %v862
        %v879 = vadd.f32 %v843, %v863
        %v880 = vadd.f32 %v844, %v864
        %v881 = vadd.f32 %v845, %v865
        %v882 = vadd.f32 %v846, %v866
        %v883 = vadd.f32 %v847, %v867
        %v884 = vadd.f32 %v848, %v868
        %v885 = vadd.f32 %v849, %v869
        %v886 = vadd.f32 %v850, %v870
        %v887 = vadd.f32 %v851, %v871
        %v888 = vadd.f32 %v852, %v872
        %v889 = vadd.f32 %v853, %v873
        %v890 = vlaneseq
        %v891 = vshrl.u32 %v890, 7
        %v892 = vsub.s32 0, %v891
        %v893 = vrot.slane %v594, %v892
        %v894 = vmul.f32 %v577, %v893
        %v895 = vmul.f32 %v578, %v893
        %v896 = vmul.f32 %v579, %v893
        %v897 = vmul.f32 %v580, %v893
        %v898 = vmul.f32 %v581, %v893
        %v899 = vmul.f32 %v582, %v893
        %v900 = vmul.f32 %v583, %v893
        %v901 = vmul.f32 %v584, %v893
        %v902 = vmul.f32 %v585, %v893
        %v903 = vmul.f32 %v586, %v893
        %v904 = vmul.f32 %v587, %v893
        %v905 = vmul.f32 %v588, %v893
        %v906 = vmul.f32 %v589, %v893
        %v907 = vmul.f32 %v590, %v893
        %v908 = vmul.f32 %v591, %v893
        %v909 = vmul.f32 %v592, %v893
        %v910 = vadd.f32 %v874, %v894
        %v911 = vadd.f32 %v875, %v895
        %v912 = vadd.f32 %v876, %v896
        %v913 = vadd.f32 %v877, %v897
        %v914 = vadd.f32 %v878, %v898
        %v915 = vadd.f32 %v879, %v899
        %v916 = vadd.f32 %v880, %v900
        %v917 = vadd.f32 %v881, %v901
        %v918 = vadd.f32 %v882, %v902
        %v919 = vadd.f32 %v883, %v903
        %v920 = vadd.f32 %v884, %v904
        %v921 = vadd.f32 %v885, %v905
        %v922 = vadd.f32 %v886, %v906
        %v923 = vadd.f32 %v887, %v907
        %v924 = vadd.f32 %v888, %v908
        %v925 = vadd.f32 %v889, %v909
        %926 = vst [vmem:[%s370] sm:$0xff] %v910
        %927 = vst [vmem:[%s370 + $0x8] sm:$0xff] %v911
        %928 = vst [vmem:[%s370 + $0x10] sm:$0xff] %v912
        %929 = vst [vmem:[%s370 + $0x18] sm:$0xff] %v913
        %930 = vst [vmem:[%s370 + $0x20] sm:$0xff] %v914
        %931 = vst [vmem:[%s370 + $0x28] sm:$0xff] %v915
        %932 = vst [vmem:[%s370 + $0x30] sm:$0xff] %v916
        %933 = vst [vmem:[%s370 + $0x38] sm:$0xff] %v917
        %934 = vst [vmem:[%s370 + $0x40] sm:$0xff] %v918
        %935 = vst [vmem:[%s370 + $0x48] sm:$0xff] %v919
        %936 = vst [vmem:[%s370 + $0x50] sm:$0xff] %v920
        %937 = vst [vmem:[%s370 + $0x58] sm:$0xff] %v921
        %938 = vst [vmem:[%s370 + $0x60] sm:$0xff] %v922
        %939 = vst [vmem:[%s370 + $0x68] sm:$0xff] %v923
        %940 = vst [vmem:[%s370 + $0x70] sm:$0xff] %v924
        %941 = vst [vmem:[%s370 + $0x78] sm:$0xff] %v925
        %s942 = sand.u32 %s189, 1
        %s943 = scalar_lea.sflag [#allocation5], %s942
        %s944 = sand.u32 %s189, 1
        %s945 = smul.addr %s944, 128
        %s946 = scalar_lea.vmem [#allocation9], %s945
        // Predicated region
        $region69: #{_lambda_.1} parent=39 // pred_check
          %p947 = pneg %p199
        $region70: #{_lambda_.1} parent=39 // pred_check_branch
          %949 = sbr.rel (%p947) target = $region72
        $region71: #{_lambda_.1} parent=39 // pred_region
          %s950 = smul.u32 8, %s30
          %s952 = ssub.s32 2048, 2048
          %953 = vsyncadd %s943, %s952
          %s954 = smul.addr %s950, 2
          %s955 = smul.addr %s29, 32
          %s956 = sadd.s32 %s954, %s955
          %s957 = smul.addr %s956, 128
          %s958 = scalar_lea.hbm %s5, %s957
          %s959 = sshll.u32 %s946, 4
          %s960 = int_to_ptr.vmem [resolvable:$true] %s959
          %965 = dma.vmem_to_hbm [thread:$0]  %s960, 2048, %s958, %s943, 128, 128, 8
        $region72: #{_lambda_.1} parent=39 // pred_fallthru
          _
      $region40: #{_lambda_.1} parent=5 // pred_fallthru
        _
      %p966 = scmp.le.s32.totalorder 2, %s20
      // Predicated region
      $region73: #{_lambda_.1} parent=5 // pred_check
        %p967 = pneg %p966
      $region74: #{_lambda_.1} parent=5 // pred_check_branch
        %969 = sbr.rel (%p967) target = $region76
      $region75: #{_lambda_.1} parent=5 // pred_region
        %s970 = ssub.s32 %s20, 2
        // Predicated region
        $region77: #{_lambda_.1} parent=75 // pred_check
          %p971 = pneg %p205
        $region78: #{_lambda_.1} parent=75 // pred_check_branch
          %973 = sbr.rel (%p971) target = $region80
        $region79: #{_lambda_.1} parent=75 // pred_region
          %s974 = sand.u32 %s190, 1
          %s975 = scalar_lea.sflag [#allocation5], %s974
          %s976 = sand.u32 %s190, 1
          %s977 = smul.addr %s976, 128
          %s978 = scalar_lea.vmem [#allocation9], %s977
          %979 = dma.done %s975, 2048
        $region80: #{_lambda_.1} parent=75 // pred_fallthru
          _
      $region76: #{_lambda_.1} parent=5 // pred_fallthru
        _
    $region6: #{_lambda_.1} parent=1 // loop_footer
      %s24 = sadd.s32 1, %s20
    $region7: #{_lambda_.1} parent=1 // loop_footer_branch
      %19 = sbr.rel target = $region3
    $region8: #{_lambda_.1} parent=1 // loop_exit
      _
    %980 = vsyncpa [#allocation4], 1
    %s981 = scalar_lea.sflag [#allocation4], 1
    %982 = vsyncpa %s981, 1
    %983 = vsyncpa [#allocation7], 1
    %s984 = scalar_lea.sflag [#allocation7], 1
    %985 = vsyncpa %s984, 1
    %986 = vsyncpa [#allocation5], 1
    %s987 = scalar_lea.sflag [#allocation5], 1
    %988 = vsyncpa %s987, 1

</llo_original>
